<compile_context>
chip_gen: v6e
topology: v6e:2x2x1
jax: 0.10.0
libtpu: 0.0.40
codegen_flags: <defaults>
</compile_context>

<pallas_src>
import math
import functools

import jax
import jax.numpy as jnp
from jax.experimental import pallas as pl
from jax.experimental.pallas import tpu as pltpu


def _madsnn_kernel(key_ref, val_ref, qry_ref,
                   w1, b1, w2, b2, w3, b3,
                   out_ref, *, kern_type, matmul_dtype):
    bB, Lk, Dk = key_ref.shape
    _, Lq, _ = qry_ref.shape
    Do = w3.shape[1]

    def mlp2d(x2d):
        # One big 2-D matmul per layer (batch and sequence flattened together).
        h = jnp.dot(x2d.astype(matmul_dtype), w1[...].astype(matmul_dtype),
                    preferred_element_type=jnp.float32) + b1[...]
        h = jnp.maximum(h, 0.0)
        h = jnp.dot(h.astype(matmul_dtype), w2[...].astype(matmul_dtype),
                    preferred_element_type=jnp.float32) + b2[...]
        h = jnp.maximum(h, 0.0)
        h = jnp.dot(h.astype(matmul_dtype), w3[...].astype(matmul_dtype),
                    preferred_element_type=jnp.float32) + b3[...]
        return h

    # Shared MLP applied to keys and queries (flatten batch into rows: no-op relayout
    # since Lk / Lq are sublane-aligned at these shapes).
    Wk = mlp2d(key_ref[...].reshape(bB * Lk, Dk)).reshape(bB, Lk, Do)   # (bB, Lk, Do)
    Wq = mlp2d(qry_ref[...].reshape(bB * Lq, Dk)).reshape(bB, Lq, Do)   # (bB, Lq, Do)

    # q.k^T per batch, no explicit transposes (contract the feature axis directly).
    qk = jax.lax.dot_general(
        Wq.astype(matmul_dtype), Wk.astype(matmul_dtype),
        dimension_numbers=(((2,), (2,)), ((0,), (0,))),
        preferred_element_type=jnp.float32)                             # (bB, Lq, Lk)

    k_sq = jnp.sum(Wk * Wk, axis=-1)                                    # (bB, Lk)
    if kern_type == "gauss":
        # -dist^2/2 = q.k - ||k||^2/2 - ||q||^2/2 ; the ||q||^2 term is constant along
        # the softmax (key) axis and cancels, so it is dropped entirely.
        scores = qk - (0.5 * k_sq)[:, None, :]
    elif kern_type == "exp":
        q_sq = jnp.sum(Wq * Wq, axis=-1, keepdims=True)                 # (bB, Lq, 1)
        sq = jnp.maximum(q_sq + k_sq[:, None, :] - 2.0 * qk, 0.0)
        scores = -0.5 * jnp.sqrt(sq)
    else:
        raise ValueError(f"unknown kernel type: {kern_type}")

    # softmax over the key axis (PyTorch dim=1) == last axis of the (Lq, Lk) score tile.
    m = jnp.max(scores, axis=-1, keepdims=True)
    e = jnp.exp(scores - m)
    denom = jnp.sum(e, axis=-1, keepdims=True)
    w = e * pl.reciprocal(denom, approx=True)                           # (bB, Lq, Lk)

    # context[b, q, d] = sum_k w[b, q, k] * V[b, k, d]
    ctx = jax.lax.dot_general(
        w.astype(matmul_dtype), val_ref[...].astype(matmul_dtype),
        dimension_numbers=(((2,), (1,)), ((0,), (0,))),
        preferred_element_type=jnp.float32)                             # (bB, Lq, Dv)

    out_ref[...] = ctx.astype(out_ref.dtype)
    # TODO(synk): training-mode dropout is identity in eval mode; not implemented.


def _full_spec(shape):
    # full-array block, independent of the batch grid index
    ndim = len(shape)
    return pl.BlockSpec(shape, lambda b: (0,) * ndim)


def _choose_batch_block(B, per_batch_bytes, budget_bytes=24 << 20):
    """Largest divisor-of-B batch block that fits the VMEM budget, while keeping at
    least 2 grid steps when B >= 2 so both v7x TensorCores get work."""
    bb = max(1, min(B, budget_bytes // max(per_batch_bytes, 1)))
    if B >= 2:
        bb = min(bb, max(1, B // 2))
    while B % bb:
        bb -= 1
    return bb


def madsnn_forward(KEY, VALUE, QUERY, params, *, kern_type="gauss",
                   matmul_dtype=jnp.bfloat16):
    B, Lk, Dk = KEY.shape
    Bv, Lkv, Dv = VALUE.shape
    Bq, Lq, Dq = QUERY.shape
    assert Dq == Dk, "shared MLP: QUERY feature dim must equal KEY feature dim"
    assert Bv == B and Bq == B and Lkv == Lk

    w1, b1, w2, b2, w3, b3 = (params[n] for n in ("w1", "b1", "w2", "b2", "w3", "b3"))
    H, Do = w1.shape[1], w3.shape[1]

    # Cast the MXU weight operands once in the wrapper (halves weight DMA in bf16 mode).
    w1c, w2c, w3c = (w.astype(matmul_dtype) for w in (w1, w2, w3))
    weights = [w1c, b1, w2c, b2, w3c, b3]

    # Rough per-batch f32 working set (activations + score tile) used to size bB.
    per_batch = 4 * ((Lk + Lq) * (Dk + 2 * H + Do) + 3 * Lq * Lk + Lk * Dv + Lq * Dv)
    bB = _choose_batch_block(B, per_batch)
    grid = (B // bB,)

    in_specs = [
        pl.BlockSpec((bB, Lk, Dk), lambda b: (b, 0, 0)),   # KEY
        pl.BlockSpec((bB, Lk, Dv), lambda b: (b, 0, 0)),   # VALUE
        pl.BlockSpec((bB, Lq, Dq), lambda b: (b, 0, 0)),   # QUERY
    ] + [_full_spec(w.shape) for w in weights]
    out_spec = pl.BlockSpec((bB, Lq, Dv), lambda b: (b, 0, 0))

    # VMEM budget: double-buffered batch blocks + weights + activation headroom.
    block_bytes = 4 * bB * (Lk * Dk + Lk * Dv + Lq * Dq + Lq * Dv) * 2
    weight_bytes = sum(int(w.size) * w.dtype.itemsize for w in weights) * 2
    vmem_limit = int(min(48 << 20,
                         max(16 << 20,
                             block_bytes + weight_bytes + bB * per_batch + (4 << 20))))

    kernel = functools.partial(_madsnn_kernel, kern_type=kern_type,
                               matmul_dtype=matmul_dtype)

    return pl.pallas_call(
        kernel,
        out_shape=jax.ShapeDtypeStruct((B, Lq, Dv), jnp.float32),
        grid_spec=pltpu.PrefetchScalarGridSpec(
            num_scalar_prefetch=0,
            grid=grid,
            in_specs=in_specs,
            out_specs=out_spec,
        ),
        compiler_params=pltpu.CompilerParams(
            dimension_semantics=("parallel",),
            vmem_limit_bytes=vmem_limit,
        ),
    )(KEY, VALUE, QUERY, *weights)


def init_params(key, input_k, hidden_size):
    """PyTorch nn.Linear-style init. Weights stored as (in, out); biases as (1, out)."""
    ks = jax.random.split(key, 3)

    def lin(k, fan_in, fan_out):
        bound = 1.0 / math.sqrt(fan_in)
        kw, kb = jax.random.split(k)
        w = jax.random.uniform(kw, (fan_in, fan_out), jnp.float32, -bound, bound)
        b = jax.random.uniform(kb, (1, fan_out), jnp.float32, -bound, bound)
        return w, b

    p = {}
    p["w1"], p["b1"] = lin(ks[0], input_k, hidden_size)
    p["w2"], p["b2"] = lin(ks[1], hidden_size, hidden_size)
    p["w3"], p["b3"] = lin(ks[2], hidden_size, input_k)
    return p


def madsnn_reference(KEY, VALUE, QUERY, p, kern_type="gauss"):
    """Pure-JAX f32 reference (eval-mode PyTorch semantics, type='nwd')."""
    def mlp(x):
        h = jnp.maximum(x @ p["w1"] + p["b1"], 0.0)
        h = jnp.maximum(h @ p["w2"] + p["b2"], 0.0)
        return h @ p["w3"] + p["b3"]

    Wk = mlp(KEY)
    Wq = mlp(QUERY)
    diff = Wk[:, :, None, :] - Wq[:, None, :, :]
    dist = jnp.sqrt(jnp.sum(diff * diff, axis=-1))        # cdist(Wk, Wq): (B, Lk, Lq)
    if kern_type == "gauss":
        scores = -(dist ** 2) / 2.0
    else:
        scores = -dist / 2.0
    w = jax.nn.softmax(scores, axis=1)                    # softmax over the key axis
    # weights[:, range(Lk)] in the PyTorch code is an identity row-selection.
    return jnp.einsum("bij,bik->bjk", w, VALUE)           # (B, Lq, Dv)


if __name__ == "__main__":
    B = 4
    Lk = 8          # key / value sequence length
    Lq = 8          # query sequence length
    input_k = 4     # KEY / QUERY feature dim (shared MLP)
    input_v = 4     # VALUE feature dim
    hidden_size = 32

    root = jax.random.PRNGKey(0)
    kp, kk, kv, kq = jax.random.split(root, 4)

    params = init_params(kp, input_k, hidden_size)
    KEY = jax.random.normal(kk, (B, Lk, input_k), jnp.float32)
    VALUE = jax.random.normal(kv, (B, Lk, input_v), jnp.float32)
    QUERY = jax.random.normal(kq, (B, Lq, input_k), jnp.float32)

    # 1) default optimized path: Gaussian kernel, bf16 MXU operands, f32 accumulation.
    out = madsnn_forward(KEY, VALUE, QUERY, params,
                         kern_type="gauss", matmul_dtype=jnp.bfloat16)
    out = jax.block_until_ready(out)
    ref = madsnn_reference(KEY, VALUE, QUERY, params, kern_type="gauss")
    assert out.shape == (B, Lq, input_v), out.shape
    assert jnp.allclose(out, ref, atol=7e-2, rtol=7e-2), float(jnp.max(jnp.abs(out - ref)))

    # 2) full-f32 MXU path (tight check of exact module semantics).
    out32 = madsnn_forward(KEY, VALUE, QUERY, params,
                           kern_type="gauss", matmul_dtype=jnp.float32)
    out32 = jax.block_until_ready(out32)
    assert jnp.allclose(out32, ref, atol=1e-2, rtol=1e-2), float(jnp.max(jnp.abs(out32 - ref)))

    # 3) exponential kernel variant.
    out_e = madsnn_forward(KEY, VALUE, QUERY, params,
                           kern_type="exp", matmul_dtype=jnp.float32)
    out_e = jax.block_until_ready(out_e)
    ref_e = madsnn_reference(KEY, VALUE, QUERY, params, kern_type="exp")
    assert jnp.allclose(out_e, ref_e, atol=1e-2, rtol=1e-2), float(jnp.max(jnp.abs(out_e - ref_e)))

    print("KERNEL_OK")
</pallas_src>

<mosaic_0001>
module attributes {stable_mosaic.version = 11 : i64} {
  func.func @_madsnn_kernel(%arg0: i32, %arg1: memref<2x8x4xf32, #tpu.memory_space<vmem>>, %arg2: memref<2x8x4xf32, #tpu.memory_space<vmem>>, %arg3: memref<2x8x4xf32, #tpu.memory_space<vmem>>, %arg4: memref<4x32xbf16, #tpu.memory_space<vmem>>, %arg5: memref<1x32xf32, #tpu.memory_space<vmem>>, %arg6: memref<32x32xbf16, #tpu.memory_space<vmem>>, %arg7: memref<1x32xf32, #tpu.memory_space<vmem>>, %arg8: memref<32x4xbf16, #tpu.memory_space<vmem>>, %arg9: memref<1x4xf32, #tpu.memory_space<vmem>>, %arg10: memref<2x8x4xf32, #tpu.memory_space<vmem>>) attributes {dimension_semantics = [#tpu.dimension_semantics<parallel>], iteration_bounds = array<i64: 2>, scalar_prefetch = 0 : i64, scratch_operands = 0 : i64, tpu.core_type = #tpu.core_type<tc>, window_params = [{transform_indices = @transform_0, window_bounds = array<i64: 2, 8, 4>}, {transform_indices = @transform_1, window_bounds = array<i64: 2, 8, 4>}, {transform_indices = @transform_2, window_bounds = array<i64: 2, 8, 4>}, {pipeline_mode = #tpu.pipeline_mode<synchronous>, transform_indices = @transform_3, window_bounds = array<i64: 4, 32>}, {pipeline_mode = #tpu.pipeline_mode<synchronous>, transform_indices = @transform_4, window_bounds = array<i64: 1, 32>}, {pipeline_mode = #tpu.pipeline_mode<synchronous>, transform_indices = @transform_5, window_bounds = array<i64: 32, 32>}, {pipeline_mode = #tpu.pipeline_mode<synchronous>, transform_indices = @transform_6, window_bounds = array<i64: 1, 32>}, {pipeline_mode = #tpu.pipeline_mode<synchronous>, transform_indices = @transform_7, window_bounds = array<i64: 32, 4>}, {pipeline_mode = #tpu.pipeline_mode<synchronous>, transform_indices = @transform_8, window_bounds = array<i64: 1, 4>}, {transform_indices = @transform_9, window_bounds = array<i64: 2, 8, 4>}]} {
    %c0 = arith.constant 0 : index
    %c0_0 = arith.constant 0 : index
    %c0_1 = arith.constant 0 : index
    %0 = vector.load %arg1[%c0, %c0_0, %c0_1] : memref<2x8x4xf32, #tpu.memory_space<vmem>>, vector<2x8x4xf32>
    %1 = vector.shape_cast %0 : vector<2x8x4xf32> to vector<16x4xf32>
    %2 = arith.truncf %1 : vector<16x4xf32> to vector<16x4xbf16>
    %c0_2 = arith.constant 0 : index
    %c0_3 = arith.constant 0 : index
    %3 = vector.load %arg4[%c0_2, %c0_3] : memref<4x32xbf16, #tpu.memory_space<vmem>>, vector<4x32xbf16>
    %cst = arith.constant dense<0.000000e+00> : vector<16x32xf32>
    %4 = tpu.matmul %2, %3, %cst {dimension_numbers = #tpu.dot_dimension_numbers<[1], [0], [0], [1], [0, 0, 1, 1], [], []>} : vector<16x4xbf16>, vector<4x32xbf16>, vector<16x32xf32> -> vector<16x32xf32>
    %c0_4 = arith.constant 0 : index
    %c0_5 = arith.constant 0 : index
    %5 = vector.load %arg5[%c0_4, %c0_5] : memref<1x32xf32, #tpu.memory_space<vmem>>, vector<1x32xf32>
    %6 = vector.broadcast %5 : vector<1x32xf32> to vector<16x32xf32>
    %7 = arith.addf %4, %6 : vector<16x32xf32>
    %cst_6 = arith.constant 0.000000e+00 : f32
    %8 = vector.broadcast %cst_6 : f32 to vector<16x32xf32>
    %9 = arith.maximumf %7, %8 : vector<16x32xf32>
    %10 = arith.truncf %9 : vector<16x32xf32> to vector<16x32xbf16>
    %c0_7 = arith.constant 0 : index
    %c0_8 = arith.constant 0 : index
    %11 = vector.load %arg6[%c0_7, %c0_8] : memref<32x32xbf16, #tpu.memory_space<vmem>>, vector<32x32xbf16>
    %cst_9 = arith.constant dense<0.000000e+00> : vector<16x32xf32>
    %12 = tpu.matmul %10, %11, %cst_9 {dimension_numbers = #tpu.dot_dimension_numbers<[1], [0], [0], [1], [0, 0, 1, 1], [], []>} : vector<16x32xbf16>, vector<32x32xbf16>, vector<16x32xf32> -> vector<16x32xf32>
    %c0_10 = arith.constant 0 : index
    %c0_11 = arith.constant 0 : index
    %13 = vector.load %arg7[%c0_10, %c0_11] : memref<1x32xf32, #tpu.memory_space<vmem>>, vector<1x32xf32>
    %14 = vector.broadcast %13 : vector<1x32xf32> to vector<16x32xf32>
    %15 = arith.addf %12, %14 : vector<16x32xf32>
    %cst_12 = arith.constant 0.000000e+00 : f32
    %16 = vector.broadcast %cst_12 : f32 to vector<16x32xf32>
    %17 = arith.maximumf %15, %16 : vector<16x32xf32>
    %18 = arith.truncf %17 : vector<16x32xf32> to vector<16x32xbf16>
    %c0_13 = arith.constant 0 : index
    %c0_14 = arith.constant 0 : index
    %19 = vector.load %arg8[%c0_13, %c0_14] : memref<32x4xbf16, #tpu.memory_space<vmem>>, vector<32x4xbf16>
    %cst_15 = arith.constant dense<0.000000e+00> : vector<16x4xf32>
    %20 = tpu.matmul %18, %19, %cst_15 {dimension_numbers = #tpu.dot_dimension_numbers<[1], [0], [0], [1], [0, 0, 1, 1], [], []>} : vector<16x32xbf16>, vector<32x4xbf16>, vector<16x4xf32> -> vector<16x4xf32>
    %c0_16 = arith.constant 0 : index
    %c0_17 = arith.constant 0 : index
    %21 = vector.load %arg9[%c0_16, %c0_17] : memref<1x4xf32, #tpu.memory_space<vmem>>, vector<1x4xf32>
    %22 = vector.broadcast %21 : vector<1x4xf32> to vector<16x4xf32>
    %23 = arith.addf %20, %22 : vector<16x4xf32>
    %24 = vector.shape_cast %23 : vector<16x4xf32> to vector<2x8x4xf32>
    %c0_18 = arith.constant 0 : index
    %c0_19 = arith.constant 0 : index
    %c0_20 = arith.constant 0 : index
    %25 = vector.load %arg3[%c0_18, %c0_19, %c0_20] : memref<2x8x4xf32, #tpu.memory_space<vmem>>, vector<2x8x4xf32>
    %26 = vector.shape_cast %25 : vector<2x8x4xf32> to vector<16x4xf32>
    %27 = arith.truncf %26 : vector<16x4xf32> to vector<16x4xbf16>
    %c0_21 = arith.constant 0 : index
    %c0_22 = arith.constant 0 : index
    %28 = vector.load %arg4[%c0_21, %c0_22] : memref<4x32xbf16, #tpu.memory_space<vmem>>, vector<4x32xbf16>
    %cst_23 = arith.constant dense<0.000000e+00> : vector<16x32xf32>
    %29 = tpu.matmul %27, %28, %cst_23 {dimension_numbers = #tpu.dot_dimension_numbers<[1], [0], [0], [1], [0, 0, 1, 1], [], []>} : vector<16x4xbf16>, vector<4x32xbf16>, vector<16x32xf32> -> vector<16x32xf32>
    %c0_24 = arith.constant 0 : index
    %c0_25 = arith.constant 0 : index
    %30 = vector.load %arg5[%c0_24, %c0_25] : memref<1x32xf32, #tpu.memory_space<vmem>>, vector<1x32xf32>
    %31 = vector.broadcast %30 : vector<1x32xf32> to vector<16x32xf32>
    %32 = arith.addf %29, %31 : vector<16x32xf32>
    %cst_26 = arith.constant 0.000000e+00 : f32
    %33 = vector.broadcast %cst_26 : f32 to vector<16x32xf32>
    %34 = arith.maximumf %32, %33 : vector<16x32xf32>
    %35 = arith.truncf %34 : vector<16x32xf32> to vector<16x32xbf16>
    %c0_27 = arith.constant 0 : index
    %c0_28 = arith.constant 0 : index
    %36 = vector.load %arg6[%c0_27, %c0_28] : memref<32x32xbf16, #tpu.memory_space<vmem>>, vector<32x32xbf16>
    %cst_29 = arith.constant dense<0.000000e+00> : vector<16x32xf32>
    %37 = tpu.matmul %35, %36, %cst_29 {dimension_numbers = #tpu.dot_dimension_numbers<[1], [0], [0], [1], [0, 0, 1, 1], [], []>} : vector<16x32xbf16>, vector<32x32xbf16>, vector<16x32xf32> -> vector<16x32xf32>
    %c0_30 = arith.constant 0 : index
    %c0_31 = arith.constant 0 : index
    %38 = vector.load %arg7[%c0_30, %c0_31] : memref<1x32xf32, #tpu.memory_space<vmem>>, vector<1x32xf32>
    %39 = vector.broadcast %38 : vector<1x32xf32> to vector<16x32xf32>
    %40 = arith.addf %37, %39 : vector<16x32xf32>
    %cst_32 = arith.constant 0.000000e+00 : f32
    %41 = vector.broadcast %cst_32 : f32 to vector<16x32xf32>
    %42 = arith.maximumf %40, %41 : vector<16x32xf32>
    %43 = arith.truncf %42 : vector<16x32xf32> to vector<16x32xbf16>
    %c0_33 = arith.constant 0 : index
    %c0_34 = arith.constant 0 : index
    %44 = vector.load %arg8[%c0_33, %c0_34] : memref<32x4xbf16, #tpu.memory_space<vmem>>, vector<32x4xbf16>
    %cst_35 = arith.constant dense<0.000000e+00> : vector<16x4xf32>
    %45 = tpu.matmul %43, %44, %cst_35 {dimension_numbers = #tpu.dot_dimension_numbers<[1], [0], [0], [1], [0, 0, 1, 1], [], []>} : vector<16x32xbf16>, vector<32x4xbf16>, vector<16x4xf32> -> vector<16x4xf32>
    %c0_36 = arith.constant 0 : index
    %c0_37 = arith.constant 0 : index
    %46 = vector.load %arg9[%c0_36, %c0_37] : memref<1x4xf32, #tpu.memory_space<vmem>>, vector<1x4xf32>
    %47 = vector.broadcast %46 : vector<1x4xf32> to vector<16x4xf32>
    %48 = arith.addf %45, %47 : vector<16x4xf32>
    %49 = vector.shape_cast %48 : vector<16x4xf32> to vector<2x8x4xf32>
    %50 = arith.truncf %49 : vector<2x8x4xf32> to vector<2x8x4xbf16>
    %51 = arith.truncf %24 : vector<2x8x4xf32> to vector<2x8x4xbf16>
    %cst_38 = arith.constant dense<0.000000e+00> : vector<2x8x8xf32>
    %52 = tpu.matmul %50, %51, %cst_38 {dimension_numbers = #tpu.dot_dimension_numbers<[2], [2], [1], [1], [0, 0, 0, 1, 1, 1], [0], [0]>} : vector<2x8x4xbf16>, vector<2x8x4xbf16>, vector<2x8x8xf32> -> vector<2x8x8xf32>
    %53 = arith.mulf %24, %24 : vector<2x8x4xf32>
    %cst_39 = arith.constant dense<0.000000e+00> : vector<2x8xf32>
    %54 = vector.multi_reduction <add>, %53, %cst_39 [2] : vector<2x8x4xf32> to vector<2x8xf32>
    %cst_40 = arith.constant 5.000000e-01 : f32
    %55 = vector.broadcast %cst_40 : f32 to vector<2x8xf32>
    %56 = arith.mulf %55, %54 : vector<2x8xf32>
    %57 = vector.shape_cast %56 : vector<2x8xf32> to vector<2x1x8xf32>
    %58 = vector.broadcast %57 : vector<2x1x8xf32> to vector<2x8x8xf32>
    %59 = arith.subf %52, %58 : vector<2x8x8xf32>
    %cst_41 = arith.constant dense<0xFF800000> : vector<2x8xf32>
    %60 = vector.multi_reduction <maximumf>, %59, %cst_41 [2] : vector<2x8x8xf32> to vector<2x8xf32>
    %61 = vector.shape_cast %60 : vector<2x8xf32> to vector<2x8x1xf32>
    %62 = vector.broadcast %61 : vector<2x8x1xf32> to vector<2x8x8xf32>
    %63 = arith.subf %59, %62 : vector<2x8x8xf32>
    %64 = math.exp %63 : vector<2x8x8xf32>
    %cst_42 = arith.constant dense<0.000000e+00> : vector<2x8xf32>
    %65 = vector.multi_reduction <add>, %64, %cst_42 [2] : vector<2x8x8xf32> to vector<2x8xf32>
    %66 = vector.shape_cast %65 : vector<2x8xf32> to vector<2x8x1xf32>
    %67 = tpu.reciprocal %66 {approx = true} : vector<2x8x1xf32> -> vector<2x8x1xf32>
    %68 = vector.broadcast %67 : vector<2x8x1xf32> to vector<2x8x8xf32>
    %69 = arith.mulf %64, %68 : vector<2x8x8xf32>
    %70 = arith.truncf %69 : vector<2x8x8xf32> to vector<2x8x8xbf16>
    %c0_43 = arith.constant 0 : index
    %c0_44 = arith.constant 0 : index
    %c0_45 = arith.constant 0 : index
    %71 = vector.load %arg2[%c0_43, %c0_44, %c0_45] : memref<2x8x4xf32, #tpu.memory_space<vmem>>, vector<2x8x4xf32>
    %72 = arith.truncf %71 : vector<2x8x4xf32> to vector<2x8x4xbf16>
    %cst_46 = arith.constant dense<0.000000e+00> : vector<2x8x4xf32>
    %73 = tpu.matmul %70, %72, %cst_46 {dimension_numbers = #tpu.dot_dimension_numbers<[2], [1], [1], [2], [0, 0, 0, 1, 1, 2], [0], [0]>} : vector<2x8x8xbf16>, vector<2x8x4xbf16>, vector<2x8x4xf32> -> vector<2x8x4xf32>
    %c0_47 = arith.constant 0 : index
    %c0_48 = arith.constant 0 : index
    %c0_49 = arith.constant 0 : index
    %74 = vector.load %arg10[%c0_47, %c0_48, %c0_49] : memref<2x8x4xf32, #tpu.memory_space<vmem>>, vector<2x8x4xf32>
    tpu.vector_store %arg10[%c0_47, %c0_48, %c0_49], %73 {strides = array<i32>} : memref<2x8x4xf32, #tpu.memory_space<vmem>>, vector<2x8x4xf32>,
    return
  }
  func.func @transform_0(%arg0: i32) -> (i32, i32, i32) {
    %c0_i32 = arith.constant 0 : i32
    %c0_i32_0 = arith.constant 0 : i32
    %c0_i32_1 = arith.constant 0 : i32
    return %arg0, %c0_i32, %c0_i32_0 : i32, i32, i32
  }
  func.func @transform_1(%arg0: i32) -> (i32, i32, i32) {
    %c0_i32 = arith.constant 0 : i32
    %c0_i32_0 = arith.constant 0 : i32
    %c0_i32_1 = arith.constant 0 : i32
    return %arg0, %c0_i32, %c0_i32_0 : i32, i32, i32
  }
  func.func @transform_2(%arg0: i32) -> (i32, i32, i32) {
    %c0_i32 = arith.constant 0 : i32
    %c0_i32_0 = arith.constant 0 : i32
    %c0_i32_1 = arith.constant 0 : i32
    return %arg0, %c0_i32, %c0_i32_0 : i32, i32, i32
  }
  func.func @transform_3(%arg0: i32) -> (i32, i32) {
    %c0_i32 = arith.constant 0 : i32
    %c0_i32_0 = arith.constant 0 : i32
    %c0_i32_1 = arith.constant 0 : i32
    return %c0_i32, %c0_i32_0 : i32, i32
  }
  func.func @transform_4(%arg0: i32) -> (i32, i32) {
    %c0_i32 = arith.constant 0 : i32
    %c0_i32_0 = arith.constant 0 : i32
    %c0_i32_1 = arith.constant 0 : i32
    return %c0_i32, %c0_i32_0 : i32, i32
  }
  func.func @transform_5(%arg0: i32) -> (i32, i32) {
    %c0_i32 = arith.constant 0 : i32
    %c0_i32_0 = arith.constant 0 : i32
    %c0_i32_1 = arith.constant 0 : i32
    return %c0_i32, %c0_i32_0 : i32, i32
  }
  func.func @transform_6(%arg0: i32) -> (i32, i32) {
    %c0_i32 = arith.constant 0 : i32
    %c0_i32_0 = arith.constant 0 : i32
    %c0_i32_1 = arith.constant 0 : i32
    return %c0_i32, %c0_i32_0 : i32, i32
  }
  func.func @transform_7(%arg0: i32) -> (i32, i32) {
    %c0_i32 = arith.constant 0 : i32
    %c0_i32_0 = arith.constant 0 : i32
    %c0_i32_1 = arith.constant 0 : i32
    return %c0_i32, %c0_i32_0 : i32, i32
  }
  func.func @transform_8(%arg0: i32) -> (i32, i32) {
    %c0_i32 = arith.constant 0 : i32
    %c0_i32_0 = arith.constant 0 : i32
    %c0_i32_1 = arith.constant 0 : i32
    return %c0_i32, %c0_i32_0 : i32, i32
  }
  func.func @transform_9(%arg0: i32) -> (i32, i32, i32) {
    %c0_i32 = arith.constant 0 : i32
    %c0_i32_0 = arith.constant 0 : i32
    %c0_i32_1 = arith.constant 0 : i32
    return %arg0, %c0_i32, %c0_i32_0 : i32, i32, i32
  }
}

</mosaic_0001>

<llo_original>
// kernel: tpu_custom_call.1
$region0: #{tpu_custom_call.1}
  #allocation0 [shape = 'u32[]', space=smem, size = 0x4, offset = 0x4, fixed_abs, tag = 'smem constant byte address 0x4 - core index']
  #allocation1 [shape = 'u32[144,128]{1,0:T(1,128)}', space=vmem, size = 0x12000, scoped, tag = 'internal scratch']
  %s0 = inlined_call_operand.vmem [shape: f32[4,8,4], index: 0, kind: input, shape index: {}]
  %s1 = inlined_call_operand.vmem [shape: f32[4,8,4], index: 1, kind: input, shape index: {}]
  %s2 = inlined_call_operand.vmem [shape: f32[4,8,4], index: 2, kind: input, shape index: {}]
  %s3 = inlined_call_operand.vmem [shape: bf16[4,32], index: 3, kind: input, shape index: {}]
  %s4 = inlined_call_operand.vmem [shape: f32[1,32], index: 4, kind: input, shape index: {}]
  %s5 = inlined_call_operand.vmem [shape: bf16[32,32], index: 5, kind: input, shape index: {}]
  %s6 = inlined_call_operand.vmem [shape: f32[1,32], index: 6, kind: input, shape index: {}]
  %s7 = inlined_call_operand.vmem [shape: bf16[32,4], index: 7, kind: input, shape index: {}]
  %s8 = inlined_call_operand.vmem [shape: f32[1,4], index: 8, kind: input, shape index: {}]
  %s9 = inlined_call_operand.vmem [shape: f32[4,8,4], index: 9, kind: output, shape index: {}]
  %s10 = sld [smem:[#allocation0]]
  $region69: #{tpu_custom_call.1} parent=0
    _
  %s12 = ssub.s32 1, %s10
  %s13 = scalar_select 0, %s12, %s10
  loop: start=0, step=1, limit=4
  $region2: #{tpu_custom_call.1} parent=0 // loop_pre_header
    _
  $region3: #{tpu_custom_call.1} parent=0 // loop_header
    %s15 = sphi 0, %s19
    %p16 = scmp.ge.s32.totalorder %s15, 4
    %s25 = sphi 0, %s27
    %s28 = sphi 0, %s25
    %s29 = sphi 0, %s28
    %s45 = sphi 0, %s29
    %s51 = sphi 0, %s53
    %s54 = sphi 0, %s51
    %s55 = sphi 0, %s54
    %s71 = sphi 0, %s55
    %s77 = sphi 0, %s79
    %s80 = sphi 0, %s77
    %s81 = sphi 0, %s80
    %s97 = sphi 0, %s81
    %s101 = sphi 0, %s101
    %s103 = sphi 0, %s101
    %s104 = sphi 0, %s103
    %s118 = sphi 0, %s104
    %s122 = sphi 0, %s122
    %s124 = sphi 0, %s122
    %s125 = sphi 0, %s124
    %s139 = sphi 0, %s125
    %s143 = sphi 0, %s143
    %s145 = sphi 0, %s143
    %s146 = sphi 0, %s145
    %s160 = sphi 0, %s146
    %s164 = sphi 0, %s164
    %s166 = sphi 0, %s164
    %s167 = sphi 0, %s166
    %s181 = sphi 0, %s167
    %s185 = sphi 0, %s185
    %s187 = sphi 0, %s185
    %s188 = sphi 0, %s187
    %s202 = sphi 0, %s188
    %s206 = sphi 0, %s206
    %s208 = sphi 0, %s206
    %s209 = sphi 0, %s208
    %s223 = sphi 0, %s209
    %s229 = sphi 0, %s231
    %s232 = sphi 0, %s229
    %s233 = sphi 0, %s232
    %s249 = sphi 0, %s233
  $region4: #{tpu_custom_call.1} parent=0 // loop_header_branch
    %18 = sbr.rel (%p16) target = $region8
  $region5: #{tpu_custom_call.1} parent=0 // loop_body
    %s20 = ssub.s32 %s15, 1
    %s21 = ssub.s32 %s15, 2
    %s22 = sadd.s32 %s15, 1
    %s23 = ssub.s32 %s15, %s22
    %p24 = scmp.eq.s32.totalorder %s23, 0
    %s26 = sadd.s32 %s25, 1
    %s27 = scalar_select %p24, %s25, %s26
    %p30 = pneg %p24
    %p31 = scmp.eq.s32.totalorder %s15, 1
    %p32 = por %p30, %p31
    %p33 = scmp.ne.s32.totalorder %s25, %s28
    %p34 = scmp.eq.s32.totalorder %s15, 0
    %p35 = por %p33, %p34
    %p36 = scmp.ne.s32.totalorder %s25, %s28
    %p37 = scmp.eq.s32.totalorder %s20, 1
    %p38 = por %p36, %p37
    %p39 = scmp.ne.s32.totalorder %s28, %s29
    %p40 = scmp.eq.s32.totalorder %s20, 0
    %p41 = por %p39, %p40
    %p42 = scmp.ne.s32.totalorder %s28, %s29
    %p43 = scmp.eq.s32.totalorder %s21, 1
    %p44 = por %p42, %p43
    %p46 = scmp.ne.s32.totalorder %s29, %s45
    %p47 = scmp.eq.s32.totalorder %s21, 0
    %p48 = por %p46, %p47
    %s49 = ssub.s32 %s15, %s22
    %p50 = scmp.eq.s32.totalorder %s49, 0
    %s52 = sadd.s32 %s51, 1
    %s53 = scalar_select %p50, %s51, %s52
    %p56 = pneg %p50
    %p57 = scmp.eq.s32.totalorder %s15, 1
    %p58 = por %p56, %p57
    %p59 = scmp.ne.s32.totalorder %s51, %s54
    %p60 = scmp.eq.s32.totalorder %s15, 0
    %p61 = por %p59, %p60
    %p62 = scmp.ne.s32.totalorder %s51, %s54
    %p63 = scmp.eq.s32.totalorder %s20, 1
    %p64 = por %p62, %p63
    %p65 = scmp.ne.s32.totalorder %s54, %s55
    %p66 = scmp.eq.s32.totalorder %s20, 0
    %p67 = por %p65, %p66
    %p68 = scmp.ne.s32.totalorder %s54, %s55
    %p69 = scmp.eq.s32.totalorder %s21, 1
    %p70 = por %p68, %p69
    %p72 = scmp.ne.s32.totalorder %s55, %s71
    %p73 = scmp.eq.s32.totalorder %s21, 0
    %p74 = por %p72, %p73
    %s75 = ssub.s32 %s15, %s22
    %p76 = scmp.eq.s32.totalorder %s75, 0
    %s78 = sadd.s32 %s77, 1
    %s79 = scalar_select %p76, %s77, %s78
    %p82 = pneg %p76
    %p83 = scmp.eq.s32.totalorder %s15, 1
    %p84 = por %p82, %p83
    %p85 = scmp.ne.s32.totalorder %s77, %s80
    %p86 = scmp.eq.s32.totalorder %s15, 0
    %p87 = por %p85, %p86
    %p88 = scmp.ne.s32.totalorder %s77, %s80
    %p89 = scmp.eq.s32.totalorder %s20, 1
    %p90 = por %p88, %p89
    %p91 = scmp.ne.s32.totalorder %s80, %s81
    %p92 = scmp.eq.s32.totalorder %s20, 0
    %p93 = por %p91, %p92
    %p94 = scmp.ne.s32.totalorder %s80, %s81
    %p95 = scmp.eq.s32.totalorder %s21, 1
    %p96 = por %p94, %p95
    %p98 = scmp.ne.s32.totalorder %s81, %s97
    %p99 = scmp.eq.s32.totalorder %s21, 0
    %p100 = por %p98, %p99
    %s102 = sadd.s32 %s101, 1
    %p105 = scmp.eq.s32.totalorder %s15, 1
    %p106 = scmp.ne.s32.totalorder %s101, %s103
    %p107 = scmp.eq.s32.totalorder %s15, 0
    %p108 = por %p106, %p107
    %p109 = scmp.ne.s32.totalorder %s101, %s103
    %p110 = scmp.eq.s32.totalorder %s20, 1
    %p111 = por %p109, %p110
    %p112 = scmp.ne.s32.totalorder %s103, %s104
    %p113 = scmp.eq.s32.totalorder %s20, 0
    %p114 = por %p112, %p113
    %p115 = scmp.ne.s32.totalorder %s103, %s104
    %p116 = scmp.eq.s32.totalorder %s21, 1
    %p117 = por %p115, %p116
    %p119 = scmp.ne.s32.totalorder %s104, %s118
    %p120 = scmp.eq.s32.totalorder %s21, 0
    %p121 = por %p119, %p120
    %s123 = sadd.s32 %s122, 1
    %p126 = scmp.eq.s32.totalorder %s15, 1
    %p127 = scmp.ne.s32.totalorder %s122, %s124
    %p128 = scmp.eq.s32.totalorder %s15, 0
    %p129 = por %p127, %p128
    %p130 = scmp.ne.s32.totalorder %s122, %s124
    %p131 = scmp.eq.s32.totalorder %s20, 1
    %p132 = por %p130, %p131
    %p133 = scmp.ne.s32.totalorder %s124, %s125
    %p134 = scmp.eq.s32.totalorder %s20, 0
    %p135 = por %p133, %p134
    %p136 = scmp.ne.s32.totalorder %s124, %s125
    %p137 = scmp.eq.s32.totalorder %s21, 1
    %p138 = por %p136, %p137
    %p140 = scmp.ne.s32.totalorder %s125, %s139
    %p141 = scmp.eq.s32.totalorder %s21, 0
    %p142 = por %p140, %p141
    %s144 = sadd.s32 %s143, 1
    %p147 = scmp.eq.s32.totalorder %s15, 1
    %p148 = scmp.ne.s32.totalorder %s143, %s145
    %p149 = scmp.eq.s32.totalorder %s15, 0
    %p150 = por %p148, %p149
    %p151 = scmp.ne.s32.totalorder %s143, %s145
    %p152 = scmp.eq.s32.totalorder %s20, 1
    %p153 = por %p151, %p152
    %p154 = scmp.ne.s32.totalorder %s145, %s146
    %p155 = scmp.eq.s32.totalorder %s20, 0
    %p156 = por %p154, %p155
    %p157 = scmp.ne.s32.totalorder %s145, %s146
    %p158 = scmp.eq.s32.totalorder %s21, 1
    %p159 = por %p157, %p158
    %p161 = scmp.ne.s32.totalorder %s146, %s160
    %p162 = scmp.eq.s32.totalorder %s21, 0
    %p163 = por %p161, %p162
    %s165 = sadd.s32 %s164, 1
    %p168 = scmp.eq.s32.totalorder %s15, 1
    %p169 = scmp.ne.s32.totalorder %s164, %s166
    %p170 = scmp.eq.s32.totalorder %s15, 0
    %p171 = por %p169, %p170
    %p172 = scmp.ne.s32.totalorder %s164, %s166
    %p173 = scmp.eq.s32.totalorder %s20, 1
    %p174 = por %p172, %p173
    %p175 = scmp.ne.s32.totalorder %s166, %s167
    %p176 = scmp.eq.s32.totalorder %s20, 0
    %p177 = por %p175, %p176
    %p178 = scmp.ne.s32.totalorder %s166, %s167
    %p179 = scmp.eq.s32.totalorder %s21, 1
    %p180 = por %p178, %p179
    %p182 = scmp.ne.s32.totalorder %s167, %s181
    %p183 = scmp.eq.s32.totalorder %s21, 0
    %p184 = por %p182, %p183
    %s186 = sadd.s32 %s185, 1
    %p189 = scmp.eq.s32.totalorder %s15, 1
    %p190 = scmp.ne.s32.totalorder %s185, %s187
    %p191 = scmp.eq.s32.totalorder %s15, 0
    %p192 = por %p190, %p191
    %p193 = scmp.ne.s32.totalorder %s185, %s187
    %p194 = scmp.eq.s32.totalorder %s20, 1
    %p195 = por %p193, %p194
    %p196 = scmp.ne.s32.totalorder %s187, %s188
    %p197 = scmp.eq.s32.totalorder %s20, 0
    %p198 = por %p196, %p197
    %p199 = scmp.ne.s32.totalorder %s187, %s188
    %p200 = scmp.eq.s32.totalorder %s21, 1
    %p201 = por %p199, %p200
    %p203 = scmp.ne.s32.totalorder %s188, %s202
    %p204 = scmp.eq.s32.totalorder %s21, 0
    %p205 = por %p203, %p204
    %s207 = sadd.s32 %s206, 1
    %p210 = scmp.eq.s32.totalorder %s15, 1
    %p211 = scmp.ne.s32.totalorder %s206, %s208
    %p212 = scmp.eq.s32.totalorder %s15, 0
    %p213 = por %p211, %p212
    %p214 = scmp.ne.s32.totalorder %s206, %s208
    %p215 = scmp.eq.s32.totalorder %s20, 1
    %p216 = por %p214, %p215
    %p217 = scmp.ne.s32.totalorder %s208, %s209
    %p218 = scmp.eq.s32.totalorder %s20, 0
    %p219 = por %p217, %p218
    %p220 = scmp.ne.s32.totalorder %s208, %s209
    %p221 = scmp.eq.s32.totalorder %s21, 1
    %p222 = por %p220, %p221
    %p224 = scmp.ne.s32.totalorder %s209, %s223
    %p225 = scmp.eq.s32.totalorder %s21, 0
    %p226 = por %p224, %p225
    %s227 = ssub.s32 %s15, %s22
    %p228 = scmp.eq.s32.totalorder %s227, 0
    %s230 = sadd.s32 %s229, 1
    %s231 = scalar_select %p228, %s229, %s230
    %p234 = pneg %p228
    %p235 = scmp.eq.s32.totalorder %s15, 1
    %p236 = por %p234, %p235
    %p237 = scmp.ne.s32.totalorder %s229, %s232
    %p238 = scmp.eq.s32.totalorder %s15, 0
    %p239 = por %p237, %p238
    %p240 = scmp.ne.s32.totalorder %s229, %s232
    %p241 = scmp.eq.s32.totalorder %s20, 1
    %p242 = por %p240, %p241
    %p243 = scmp.ne.s32.totalorder %s232, %s233
    %p244 = scmp.eq.s32.totalorder %s20, 0
    %p245 = por %p243, %p244
    %p246 = scmp.ne.s32.totalorder %s232, %s233
    %p247 = scmp.eq.s32.totalorder %s21, 1
    %p248 = por %p246, %p247
    %p250 = scmp.ne.s32.totalorder %s233, %s249
    %p251 = scmp.eq.s32.totalorder %s21, 0
    %p252 = por %p250, %p251
    %p253 = scmp.le.s32.totalorder 1, %s15
    %p254 = scmp.lt.s32.totalorder %s15, 3
    %p255 = pnand %p253, %p254
    %p256 = pneg %p255
    // Predicated region
    $region9: #{tpu_custom_call.1} parent=5 // pred_check
      _
    $region10: #{tpu_custom_call.1} parent=5 // pred_check_branch
      %258 = sbr.rel (%p255) target = $region12
    $region11: #{tpu_custom_call.1} parent=5 // pred_region
      %s259 = ssub.s32 %s15, 1
      // Predicated region
      $region13: #{tpu_custom_call.1} parent=11 // pred_check
        %p260 = pneg %p114
      $region14: #{tpu_custom_call.1} parent=11 // pred_check_branch
        %262 = sbr.rel (%p260) target = $region16
      $region15: #{tpu_custom_call.1} parent=11 // pred_region
        _
      $region16: #{tpu_custom_call.1} parent=11 // pred_fallthru
        _
      // Predicated region
      $region17: #{tpu_custom_call.1} parent=11 // pred_check
        %p263 = pneg %p135
      $region18: #{tpu_custom_call.1} parent=11 // pred_check_branch
        %265 = sbr.rel (%p263) target = $region20
      $region19: #{tpu_custom_call.1} parent=11 // pred_region
        _
      $region20: #{tpu_custom_call.1} parent=11 // pred_fallthru
        _
      // Predicated region
      $region21: #{tpu_custom_call.1} parent=11 // pred_check
        %p266 = pneg %p156
      $region22: #{tpu_custom_call.1} parent=11 // pred_check_branch
        %268 = sbr.rel (%p266) target = $region24
      $region23: #{tpu_custom_call.1} parent=11 // pred_region
        _
      $region24: #{tpu_custom_call.1} parent=11 // pred_fallthru
        _
      // Predicated region
      $region25: #{tpu_custom_call.1} parent=11 // pred_check
        %p269 = pneg %p177
      $region26: #{tpu_custom_call.1} parent=11 // pred_check_branch
        %271 = sbr.rel (%p269) target = $region28
      $region27: #{tpu_custom_call.1} parent=11 // pred_region
        _
      $region28: #{tpu_custom_call.1} parent=11 // pred_fallthru
        _
      // Predicated region
      $region29: #{tpu_custom_call.1} parent=11 // pred_check
        %p272 = pneg %p198
      $region30: #{tpu_custom_call.1} parent=11 // pred_check_branch
        %274 = sbr.rel (%p272) target = $region32
      $region31: #{tpu_custom_call.1} parent=11 // pred_region
        _
      $region32: #{tpu_custom_call.1} parent=11 // pred_fallthru
        _
      // Predicated region
      $region33: #{tpu_custom_call.1} parent=11 // pred_check
        %p275 = pneg %p219
      $region34: #{tpu_custom_call.1} parent=11 // pred_check_branch
        %277 = sbr.rel (%p275) target = $region36
      $region35: #{tpu_custom_call.1} parent=11 // pred_region
        _
      $region36: #{tpu_custom_call.1} parent=11 // pred_fallthru
        _
    $region12: #{tpu_custom_call.1} parent=5 // pred_fallthru
      _
    %p278 = scmp.lt.s32.totalorder %s15, 2
    // Predicated region
    $region37: #{tpu_custom_call.1} parent=5 // pred_check
      %p279 = pneg %p278
    $region38: #{tpu_custom_call.1} parent=5 // pred_check_branch
      %281 = sbr.rel (%p279) target = $region40
    $region39: #{tpu_custom_call.1} parent=5 // pred_region
      // Predicated region
      $region41: #{tpu_custom_call.1} parent=39 // pred_check
        %p282 = pneg %p35
      $region42: #{tpu_custom_call.1} parent=39 // pred_check_branch
        %284 = sbr.rel (%p282) target = $region44
      $region43: #{tpu_custom_call.1} parent=39 // pred_region
        %s285 = smul.u32 2, %s15
        %p286 = scmp.lt.s32.totalorder %s285, 3
        %s287 = scalar_select %p286, %s285, 3
        %s288 = smul.addr %s287, 8
        %s289 = scalar_lea.vmem %s0, %s288
        %s290 = smul.u32 2, %s15
      $region44: #{tpu_custom_call.1} parent=39 // pred_fallthru
        _
      // Predicated region
      $region45: #{tpu_custom_call.1} parent=39 // pred_check
        %p291 = pneg %p61
      $region46: #{tpu_custom_call.1} parent=39 // pred_check_branch
        %293 = sbr.rel (%p291) target = $region48
      $region47: #{tpu_custom_call.1} parent=39 // pred_region
        %s294 = smul.u32 2, %s15
        %p295 = scmp.lt.s32.totalorder %s294, 3
        %s296 = scalar_select %p295, %s294, 3
        %s297 = smul.addr %s296, 8
        %s298 = scalar_lea.vmem %s1, %s297
        %s299 = smul.u32 2, %s15
      $region48: #{tpu_custom_call.1} parent=39 // pred_fallthru
        _
      // Predicated region
      $region49: #{tpu_custom_call.1} parent=39 // pred_check
        %p300 = pneg %p87
      $region50: #{tpu_custom_call.1} parent=39 // pred_check_branch
        %302 = sbr.rel (%p300) target = $region52
      $region51: #{tpu_custom_call.1} parent=39 // pred_region
        %s303 = smul.u32 2, %s15
        %p304 = scmp.lt.s32.totalorder %s303, 3
        %s305 = scalar_select %p304, %s303, 3
        %s306 = smul.addr %s305, 8
        %s307 = scalar_lea.vmem %s2, %s306
        %s308 = smul.u32 2, %s15
      $region52: #{tpu_custom_call.1} parent=39 // pred_fallthru
        _
    $region40: #{tpu_custom_call.1} parent=5 // pred_fallthru
      _
    %p309 = scmp.le.s32.totalorder 1, %s15
    %p310 = scmp.lt.s32.totalorder %s15, 3
    %p311 = pnand %p309, %p310
    %p312 = pneg %p311
    // Predicated region
    $region53: #{tpu_custom_call.1} parent=5 // pred_check
      _
    $region54: #{tpu_custom_call.1} parent=5 // pred_check_branch
      %314 = sbr.rel (%p311) target = $region56
    $region55: #{tpu_custom_call.1} parent=5 // pred_region
      %s315 = ssub.s32 %s15, 1
      %s316 = smul.u32 2, %s20
      %p317 = scmp.lt.s32.totalorder %s316, 3
      %s318 = scalar_select %p317, %s316, 3
      %s319 = smul.addr %s318, 8
      %s320 = scalar_lea.vmem %s0, %s319
      %p321 = pneg %p41
      %p322 = pneg %p38
      %s323 = smul.u32 2, %s20
      %p324 = scmp.lt.s32.totalorder %s323, 3
      %s325 = scalar_select %p324, %s323, 3
      %s326 = smul.addr %s325, 8
      %s327 = scalar_lea.vmem %s1, %s326
      %p328 = pneg %p67
      %p329 = pneg %p64
      %s330 = smul.u32 2, %s20
      %p331 = scmp.lt.s32.totalorder %s330, 3
      %s332 = scalar_select %p331, %s330, 3
      %s333 = smul.addr %s332, 8
      %s334 = scalar_lea.vmem %s2, %s333
      %p335 = pneg %p93
      %p336 = pneg %p90
      %p337 = pneg %p114
      %p338 = pneg %p111
      %p339 = pneg %p135
      %p340 = pneg %p132
      %p341 = pneg %p156
      %p342 = pneg %p153
      %p343 = pneg %p177
      %p344 = pneg %p174
      %p345 = pneg %p198
      %p346 = pneg %p195
      %p347 = pneg %p219
      %p348 = pneg %p216
      %p349 = pneg %p245
      %p350 = pneg %p242
      %s351 = smul.u32 2, %s20
      %p352 = scmp.lt.s32.totalorder %s351, 3
      %s353 = scalar_select %p352, %s351, 3
      %s354 = smul.addr %s353, 8
      %s355 = scalar_lea.vmem %s9, %s354
      %s356 = smul.u32 2, %s20
      %p357 = scmp.lt.s32.totalorder %s356, 3
      %s358 = scalar_select %p357, %s356, 3
      %s359 = smul.addr %s358, 8
      %s360 = scalar_lea.vmem %s0, %s359
      %s361 = smul.u32 2, %s20
      %s362 = smul.u32 2, %s20
      %p363 = scmp.lt.s32.totalorder %s362, 3
      %s364 = scalar_select %p363, %s362, 3
      %s365 = smul.addr %s364, 8
      %s366 = scalar_lea.vmem %s1, %s365
      %s367 = smul.u32 2, %s20
      %s368 = smul.u32 2, %s20
      %p369 = scmp.lt.s32.totalorder %s368, 3
      %s370 = scalar_select %p369, %s368, 3
      %s371 = smul.addr %s370, 8
      %s372 = scalar_lea.vmem %s2, %s371
      %s373 = smul.u32 2, %s20
      %s374 = smul.u32 2, %s20
      %p375 = scmp.lt.s32.totalorder %s374, 3
      %s376 = scalar_select %p375, %s374, 3
      %s377 = smul.addr %s376, 8
      %s378 = scalar_lea.vmem %s9, %s377
      %s379 = smul.u32 2, %s20
      %v381 = vld [vmem:[%s360] sm:$0xff]
      %v382 = vld [vmem:[%s360 + $0x8] sm:$0xff]
      %v383 = vpack.c.bf16 %v382, %v381
      %v384 = vld [vmem:[%s3] sm:$0x3]
      %v385 = vld [vmem:[%s4] sm:$0x1]
      %v387 = vlaneseq
      %v388 = vshrl.u32 %v387, 7
      %v389 = vsub.s32 0, %v388
      %v390 = vrot.slane %v385, %v389
      %vm392 = vcmask 31744
      %v394 = vsel %vm392, %v383, 0
      %vm396 = vcmask 1041408
      %v398 = vsel %vm396, %v384, 0
      %400 = vmatprep.subr.bf16.mxu0 0
      %401 = vmatpush1.bf16.msra.mxu0 0
      %402 = vmatprep.subr.bf16.mxu0 0
      %403 = vmatpush1.bf16.msra.mxu0 0
      %404 = vmatprep.subr.bf16.mxu0 0
      %405 = vmatpush1.bf16.msra.mxu0 0
      %406 = vmatprep.subr.bf16.mxu0 0
      %407 = vmatpush1.bf16.msra.mxu0 0
      %408 = vmatprep.subr.bf16.mxu0 0
      %409 = vmatpush1.bf16.msra.mxu0 0
      %410 = vmatprep.subr.bf16.mxu0 0
      %411 = vmatpush1.bf16.msra.mxu0 0
      %412 = vmatprep.subr.bf16.mxu0 0
      %413 = vmatpush1.bf16.msra.mxu0 0
      %414 = vmatprep.subr.bf16.mxu0 0
      %415 = vmatpush1.bf16.msra.mxu0 %v398
      %416 = vmatprep.subr.bf16.mxu0 0
      %417 = vmatpush2.bf16.msra.mxu0 0
      %418 = vmatprep.subr.bf16.mxu0 0
      %419 = vmatpush2.bf16.msra.mxu0 0
      %420 = vmatprep.subr.bf16.mxu0 0
      %421 = vmatpush2.bf16.msra.mxu0 0
      %422 = vmatprep.subr.bf16.mxu0 0
      %423 = vmatpush2.bf16.msra.mxu0 0
      %424 = vmatprep.subr.bf16.mxu0 0
      %425 = vmatpush2.bf16.msra.mxu0 0
      %426 = vmatprep.subr.bf16.mxu0 0
      %427 = vmatpush2.bf16.msra.mxu0 0
      %428 = vmatprep.subr.bf16.mxu0 0
      %429 = vmatpush2.bf16.msra.mxu0 0
      %430 = vmatprep.subr.bf16.mxu0 0
      %431 = vmatpush2.bf16.msra.mxu0 0
      %432 = vmatprep.mubr.bf16.mxu0 0
      %433 = vmatmul.mubr.bf16.gmra.mxu0 %v394
      %v434 = vpop.f32.mrf.mxu0
      %v435 = vadd.f32 %v390, %v434
      %v436 = vpop.f32.mrf.mxu0
      %v437 = vpop.f32.mrf.mxu0
      %v438 = vadd.f32 %v390, %v437
      %v439 = vpop.f32.mrf.mxu0
      %440 = vdwg.mxu0
      %v441 = vmax.f32 %v435, 0.0
      %v442 = vmax.f32 %v438, 0.0
      %v443 = vpack.c.bf16 %v442, %v441
      %v444 = vld [vmem:[%s5] sm:$0xf]
      %v445 = vld [vmem:[%s5 + $0x4] sm:$0xf]
      %v446 = vld [vmem:[%s5 + $0x8] sm:$0xf]
      %v447 = vld [vmem:[%s5 + $0xc] sm:$0xf]
      %v448 = vld [vmem:[%s6] sm:$0x1]
      %v450 = vlaneseq
      %v451 = vshrl.u32 %v450, 7
      %v452 = vsub.s32 0, %v451
      %v453 = vrot.slane %v448, %v452
      %v459 = vunpack.c.l.b16 %v444
      %v460 = vunpack.c.l.b16 %v445
      %v461 = vunpack.c.l.b16 %v446
      %v462 = vunpack.c.l.b16 %v447
      %v463 = vpack.c.b16 %v460, %v459
      %v464 = vpack.c.b16 %v462, %v461
      %vm467 = vcmask 261120
      %v469 = vsel %vm467, %v443, 0
      %471 = vmatprep.subr.bf16.mxu0 0
      %472 = vmatpush1.bf16.msra.mxu0 0
      %473 = vmatprep.subr.bf16.mxu0 0
      %474 = vmatpush1.bf16.msra.mxu0 0
      %475 = vmatprep.subr.bf16.mxu0 0
      %476 = vmatpush1.bf16.msra.mxu0 0
      %477 = vmatprep.subr.bf16.mxu0 0
      %478 = vmatpush1.bf16.msra.mxu0 0
      %479 = vmatprep.subr.bf16.mxu0 0
      %480 = vmatpush1.bf16.msra.mxu0 0
      %481 = vmatprep.subr.bf16.mxu0 0
      %482 = vmatpush1.bf16.msra.mxu0 0
      %483 = vmatprep.subr.bf16.mxu0 0
      %484 = vmatpush1.bf16.msra.mxu0 %v464
      %485 = vmatprep.subr.bf16.mxu0 0
      %486 = vmatpush1.bf16.msra.mxu0 %v463
      %487 = vmatprep.subr.bf16.mxu0 0
      %488 = vmatpush2.bf16.msra.mxu0 0
      %489 = vmatprep.subr.bf16.mxu0 0
      %490 = vmatpush2.bf16.msra.mxu0 0
      %491 = vmatprep.subr.bf16.mxu0 0
      %492 = vmatpush2.bf16.msra.mxu0 0
      %493 = vmatprep.subr.bf16.mxu0 0
      %494 = vmatpush2.bf16.msra.mxu0 0
      %495 = vmatprep.subr.bf16.mxu0 0
      %496 = vmatpush2.bf16.msra.mxu0 0
      %497 = vmatprep.subr.bf16.mxu0 0
      %498 = vmatpush2.bf16.msra.mxu0 0
      %499 = vmatprep.subr.bf16.mxu0 0
      %500 = vmatpush2.bf16.msra.mxu0 0
      %501 = vmatprep.subr.bf16.mxu0 0
      %502 = vmatpush2.bf16.msra.mxu0 0
      %503 = vmatprep.mubr.bf16.mxu0 0
      %504 = vmatmul.mubr.bf16.gmra.mxu0 %v469
      %v505 = vpop.f32.mrf.mxu0
      %v506 = vadd.f32 %v453, %v505
      %v507 = vpop.f32.mrf.mxu0
      %v508 = vpop.f32.mrf.mxu0
      %v509 = vadd.f32 %v453, %v508
      %v510 = vpop.f32.mrf.mxu0
      %511 = vdwg.mxu0
      %v512 = vmax.f32 %v506, 0.0
      %v513 = vmax.f32 %v509, 0.0
      %v514 = vpack.c.bf16 %v513, %v512
      %v515 = vld [vmem:[%s7] sm:$0xf]
      %v516 = vld [vmem:[%s7 + $0x4] sm:$0xf]
      %v517 = vld [vmem:[%s7 + $0x8] sm:$0xf]
      %v518 = vld [vmem:[%s7 + $0xc] sm:$0xf]
      %v519 = vld [vmem:[%s8] sm:$0x1]
      %v521 = vlaneseq
      %v522 = vshrl.u32 %v521, 7
      %v523 = vsub.s32 0, %v522
      %v524 = vrot.slane %v519, %v523
      %v530 = vunpack.c.l.b16 %v515
      %v531 = vunpack.c.l.b16 %v516
      %v532 = vunpack.c.l.b16 %v517
      %v533 = vunpack.c.l.b16 %v518
      %v534 = vpack.c.b16 %v531, %v530
      %v535 = vpack.c.b16 %v533, %v532
      %v539 = vsel %vm467, %v514, 0
      %541 = vmatprep.subr.bf16.mxu0 0
      %542 = vmatpush1.bf16.msra.mxu0 0
      %543 = vmatprep.subr.bf16.mxu0 0
      %544 = vmatpush1.bf16.msra.mxu0 0
      %545 = vmatprep.subr.bf16.mxu0 0
      %546 = vmatpush1.bf16.msra.mxu0 0
      %547 = vmatprep.subr.bf16.mxu0 0
      %548 = vmatpush1.bf16.msra.mxu0 0
      %549 = vmatprep.subr.bf16.mxu0 0
      %550 = vmatpush1.bf16.msra.mxu0 0
      %551 = vmatprep.subr.bf16.mxu0 0
      %552 = vmatpush1.bf16.msra.mxu0 0
      %553 = vmatprep.subr.bf16.mxu0 0
      %554 = vmatpush1.bf16.msra.mxu0 %v535
      %555 = vmatprep.subr.bf16.mxu0 0
      %556 = vmatpush1.bf16.msra.mxu0 %v534
      %557 = vmatprep.subr.bf16.mxu0 0
      %558 = vmatpush2.bf16.msra.mxu0 0
      %559 = vmatprep.subr.bf16.mxu0 0
      %560 = vmatpush2.bf16.msra.mxu0 0
      %561 = vmatprep.subr.bf16.mxu0 0
      %562 = vmatpush2.bf16.msra.mxu0 0
      %563 = vmatprep.subr.bf16.mxu0 0
      %564 = vmatpush2.bf16.msra.mxu0 0
      %565 = vmatprep.subr.bf16.mxu0 0
      %566 = vmatpush2.bf16.msra.mxu0 0
      %567 = vmatprep.subr.bf16.mxu0 0
      %568 = vmatpush2.bf16.msra.mxu0 0
      %569 = vmatprep.subr.bf16.mxu0 0
      %570 = vmatpush2.bf16.msra.mxu0 0
      %571 = vmatprep.subr.bf16.mxu0 0
      %572 = vmatpush2.bf16.msra.mxu0 0
      %573 = vmatprep.mubr.bf16.mxu0 0
      %574 = vmatmul.mubr.bf16.gmra.mxu0 %v539
      %v575 = vpop.f32.mrf.mxu0
      %v576 = vadd.f32 %v524, %v575
      %v577 = vpop.f32.mrf.mxu0
      %v578 = vpop.f32.mrf.mxu0
      %v579 = vadd.f32 %v524, %v578
      %v580 = vpop.f32.mrf.mxu0
      %581 = vdwg.mxu0
      %v582 = vld [vmem:[%s372] sm:$0xff]
      %v583 = vld [vmem:[%s372 + $0x8] sm:$0xff]
      %v584 = vpack.c.bf16 %v583, %v582
      %v586 = vsel %vm392, %v584, 0
      %588 = vmatprep.subr.bf16.mxu0 0
      %589 = vmatpush1.bf16.msra.mxu0 0
      %590 = vmatprep.subr.bf16.mxu0 0
      %591 = vmatpush1.bf16.msra.mxu0 0
      %592 = vmatprep.subr.bf16.mxu0 0
      %593 = vmatpush1.bf16.msra.mxu0 0
      %594 = vmatprep.subr.bf16.mxu0 0
      %595 = vmatpush1.bf16.msra.mxu0 0
      %596 = vmatprep.subr.bf16.mxu0 0
      %597 = vmatpush1.bf16.msra.mxu0 0
      %598 = vmatprep.subr.bf16.mxu0 0
      %599 = vmatpush1.bf16.msra.mxu0 0
      %600 = vmatprep.subr.bf16.mxu0 0
      %601 = vmatpush1.bf16.msra.mxu0 0
      %602 = vmatprep.subr.bf16.mxu0 0
      %603 = vmatpush1.bf16.msra.mxu0 %v398
      %604 = vmatprep.subr.bf16.mxu0 0
      %605 = vmatpush2.bf16.msra.mxu0 0
      %606 = vmatprep.subr.bf16.mxu0 0
      %607 = vmatpush2.bf16.msra.mxu0 0
      %608 = vmatprep.subr.bf16.mxu0 0
      %609 = vmatpush2.bf16.msra.mxu0 0
      %610 = vmatprep.subr.bf16.mxu0 0
      %611 = vmatpush2.bf16.msra.mxu0 0
      %612 = vmatprep.subr.bf16.mxu0 0
      %613 = vmatpush2.bf16.msra.mxu0 0
      %614 = vmatprep.subr.bf16.mxu0 0
      %615 = vmatpush2.bf16.msra.mxu0 0
      %616 = vmatprep.subr.bf16.mxu0 0
      %617 = vmatpush2.bf16.msra.mxu0 0
      %618 = vmatprep.subr.bf16.mxu0 0
      %619 = vmatpush2.bf16.msra.mxu0 0
      %620 = vmatprep.mubr.bf16.mxu0 0
      %621 = vmatmul.mubr.bf16.gmra.mxu0 %v586
      %v622 = vpop.f32.mrf.mxu0
      %v623 = vadd.f32 %v390, %v622
      %v624 = vpop.f32.mrf.mxu0
      %v625 = vpop.f32.mrf.mxu0
      %v626 = vadd.f32 %v390, %v625
      %v627 = vpop.f32.mrf.mxu0
      %628 = vdwg.mxu0
      %v629 = vmax.f32 %v623, 0.0
      %v630 = vmax.f32 %v626, 0.0
      %v631 = vpack.c.bf16 %v630, %v629
      %v633 = vsel %vm467, %v631, 0
      %635 = vmatprep.subr.bf16.mxu0 0
      %636 = vmatpush1.bf16.msra.mxu0 0
      %637 = vmatprep.subr.bf16.mxu0 0
      %638 = vmatpush1.bf16.msra.mxu0 0
      %639 = vmatprep.subr.bf16.mxu0 0
      %640 = vmatpush1.bf16.msra.mxu0 0
      %641 = vmatprep.subr.bf16.mxu0 0
      %642 = vmatpush1.bf16.msra.mxu0 0
      %643 = vmatprep.subr.bf16.mxu0 0
      %644 = vmatpush1.bf16.msra.mxu0 0
      %645 = vmatprep.subr.bf16.mxu0 0
      %646 = vmatpush1.bf16.msra.mxu0 0
      %647 = vmatprep.subr.bf16.mxu0 0
      %648 = vmatpush1.bf16.msra.mxu0 %v464
      %649 = vmatprep.subr.bf16.mxu0 0
      %650 = vmatpush1.bf16.msra.mxu0 %v463
      %651 = vmatprep.subr.bf16.mxu0 0
      %652 = vmatpush2.bf16.msra.mxu0 0
      %653 = vmatprep.subr.bf16.mxu0 0
      %654 = vmatpush2.bf16.msra.mxu0 0
      %655 = vmatprep.subr.bf16.mxu0 0
      %656 = vmatpush2.bf16.msra.mxu0 0
      %657 = vmatprep.subr.bf16.mxu0 0
      %658 = vmatpush2.bf16.msra.mxu0 0
      %659 = vmatprep.subr.bf16.mxu0 0
      %660 = vmatpush2.bf16.msra.mxu0 0
      %661 = vmatprep.subr.bf16.mxu0 0
      %662 = vmatpush2.bf16.msra.mxu0 0
      %663 = vmatprep.subr.bf16.mxu0 0
      %664 = vmatpush2.bf16.msra.mxu0 0
      %665 = vmatprep.subr.bf16.mxu0 0
      %666 = vmatpush2.bf16.msra.mxu0 0
      %667 = vmatprep.mubr.bf16.mxu0 0
      %668 = vmatmul.mubr.bf16.gmra.mxu0 %v633
      %v669 = vpop.f32.mrf.mxu0
      %v670 = vadd.f32 %v453, %v669
      %v671 = vpop.f32.mrf.mxu0
      %v672 = vpop.f32.mrf.mxu0
      %v673 = vadd.f32 %v453, %v672
      %v674 = vpop.f32.mrf.mxu0
      %675 = vdwg.mxu0
      %v676 = vmax.f32 %v670, 0.0
      %v677 = vmax.f32 %v673, 0.0
      %v678 = vpack.c.bf16 %v677, %v676
      %v680 = vsel %vm467, %v678, 0
      %682 = vmatprep.subr.bf16.mxu0 0
      %683 = vmatpush1.bf16.msra.mxu0 0
      %684 = vmatprep.subr.bf16.mxu0 0
      %685 = vmatpush1.bf16.msra.mxu0 0
      %686 = vmatprep.subr.bf16.mxu0 0
      %687 = vmatpush1.bf16.msra.mxu0 0
      %688 = vmatprep.subr.bf16.mxu0 0
      %689 = vmatpush1.bf16.msra.mxu0 0
      %690 = vmatprep.subr.bf16.mxu0 0
      %691 = vmatpush1.bf16.msra.mxu0 0
      %692 = vmatprep.subr.bf16.mxu0 0
      %693 = vmatpush1.bf16.msra.mxu0 0
      %694 = vmatprep.subr.bf16.mxu0 0
      %695 = vmatpush1.bf16.msra.mxu0 %v535
      %696 = vmatprep.subr.bf16.mxu0 0
      %697 = vmatpush1.bf16.msra.mxu0 %v534
      %698 = vmatprep.subr.bf16.mxu0 0
      %699 = vmatpush2.bf16.msra.mxu0 0
      %700 = vmatprep.subr.bf16.mxu0 0
      %701 = vmatpush2.bf16.msra.mxu0 0
      %702 = vmatprep.subr.bf16.mxu0 0
      %703 = vmatpush2.bf16.msra.mxu0 0
      %704 = vmatprep.subr.bf16.mxu0 0
      %705 = vmatpush2.bf16.msra.mxu0 0
      %706 = vmatprep.subr.bf16.mxu0 0
      %707 = vmatpush2.bf16.msra.mxu0 0
      %708 = vmatprep.subr.bf16.mxu0 0
      %709 = vmatpush2.bf16.msra.mxu0 0
      %710 = vmatprep.subr.bf16.mxu0 0
      %711 = vmatpush2.bf16.msra.mxu0 0
      %712 = vmatprep.subr.bf16.mxu0 0
      %713 = vmatpush2.bf16.msra.mxu0 0
      %714 = vmatprep.mubr.bf16.mxu0 0
      %715 = vmatmul.mubr.bf16.gmra.mxu0 %v680
      %v716 = vpop.f32.mrf.mxu0
      %v717 = vadd.f32 %v524, %v716
      %v718 = vpop.f32.mrf.mxu0
      %v719 = vpop.f32.mrf.mxu0
      %v720 = vadd.f32 %v524, %v719
      %v721 = vpop.f32.mrf.mxu0
      %722 = vdwg.mxu0
      %v723 = vpack.c.bf16 %v717, %v717
      %v724 = vpack.c.bf16 %v720, %v720
      %v725 = vpack.c.bf16 %v576, %v576
      %v726 = vpack.c.bf16 %v579, %v579
      %v728 = vsel %vm392, %v723, 0
      %v731 = vsel %vm392, %v725, 0
      %733 = vmatprep.subr.bf16.mxu0 0
      %734 = vmatpush1.bf16.xpose.msra.mxu0 0
      %735 = vmatprep.subr.bf16.mxu0 0
      %736 = vmatpush1.bf16.xpose.msra.mxu0 0
      %737 = vmatprep.subr.bf16.mxu0 0
      %738 = vmatpush1.bf16.xpose.msra.mxu0 0
      %739 = vmatprep.subr.bf16.mxu0 0
      %740 = vmatpush1.bf16.xpose.msra.mxu0 0
      %741 = vmatprep.subr.bf16.mxu0 0
      %742 = vmatpush1.bf16.xpose.msra.mxu0 0
      %743 = vmatprep.subr.bf16.mxu0 0
      %744 = vmatpush1.bf16.xpose.msra.mxu0 0
      %745 = vmatprep.subr.bf16.mxu0 0
      %746 = vmatpush1.bf16.xpose.msra.mxu0 0
      %747 = vmatprep.subr.bf16.mxu0 0
      %748 = vmatpush1.bf16.xpose.msra.mxu0 %v731
      %749 = vmatprep.subr.bf16.mxu0 0
      %750 = vmatpush2.bf16.xpose.msra.mxu0 0
      %751 = vmatprep.subr.bf16.mxu0 0
      %752 = vmatpush2.bf16.xpose.msra.mxu0 0
      %753 = vmatprep.subr.bf16.mxu0 0
      %754 = vmatpush2.bf16.xpose.msra.mxu0 0
      %755 = vmatprep.subr.bf16.mxu0 0
      %756 = vmatpush2.bf16.xpose.msra.mxu0 0
      %757 = vmatprep.subr.bf16.mxu0 0
      %758 = vmatpush2.bf16.xpose.msra.mxu0 0
      %759 = vmatprep.subr.bf16.mxu0 0
      %760 = vmatpush2.bf16.xpose.msra.mxu0 0
      %761 = vmatprep.subr.bf16.mxu0 0
      %762 = vmatpush2.bf16.xpose.msra.mxu0 0
      %763 = vmatprep.subr.bf16.mxu0 0
      %764 = vmatpush2.bf16.xpose.msra.mxu0 0
      %765 = vmatprep.mubr.bf16.mxu0 0
      %766 = vmatmul.mubr.bf16.gmra.mxu0 %v728
      %v767 = vpop.f32.mrf.mxu0
      %v768 = vadd.f32 0.0, %v767
      %v769 = vpop.f32.mrf.mxu0
      %v770 = vpop.f32.mrf.mxu0
      %v771 = vpop.f32.mrf.mxu0
      %772 = vdwg.mxu0
      %v774 = vsel %vm392, %v724, 0
      %v777 = vsel %vm392, %v726, 0
      %779 = vmatprep.subr.bf16.mxu0 0
      %780 = vmatpush1.bf16.xpose.msra.mxu0 0
      %781 = vmatprep.subr.bf16.mxu0 0
      %782 = vmatpush1.bf16.xpose.msra.mxu0 0
      %783 = vmatprep.subr.bf16.mxu0 0
      %784 = vmatpush1.bf16.xpose.msra.mxu0 0
      %785 = vmatprep.subr.bf16.mxu0 0
      %786 = vmatpush1.bf16.xpose.msra.mxu0 0
      %787 = vmatprep.subr.bf16.mxu0 0
      %788 = vmatpush1.bf16.xpose.msra.mxu0 0
      %789 = vmatprep.subr.bf16.mxu0 0
      %790 = vmatpush1.bf16.xpose.msra.mxu0 0
      %791 = vmatprep.subr.bf16.mxu0 0
      %792 = vmatpush1.bf16.xpose.msra.mxu0 0
      %793 = vmatprep.subr.bf16.mxu0 0
      %794 = vmatpush1.bf16.xpose.msra.mxu0 %v777
      %795 = vmatprep.subr.bf16.mxu0 0
      %796 = vmatpush2.bf16.xpose.msra.mxu0 0
      %797 = vmatprep.subr.bf16.mxu0 0
      %798 = vmatpush2.bf16.xpose.msra.mxu0 0
      %799 = vmatprep.subr.bf16.mxu0 0
      %800 = vmatpush2.bf16.xpose.msra.mxu0 0
      %801 = vmatprep.subr.bf16.mxu0 0
      %802 = vmatpush2.bf16.xpose.msra.mxu0 0
      %803 = vmatprep.subr.bf16.mxu0 0
      %804 = vmatpush2.bf16.xpose.msra.mxu0 0
      %805 = vmatprep.subr.bf16.mxu0 0
      %806 = vmatpush2.bf16.xpose.msra.mxu0 0
      %807 = vmatprep.subr.bf16.mxu0 0
      %808 = vmatpush2.bf16.xpose.msra.mxu0 0
      %809 = vmatprep.subr.bf16.mxu0 0
      %810 = vmatpush2.bf16.xpose.msra.mxu0 0
      %811 = vmatprep.mubr.bf16.mxu0 0
      %812 = vmatmul.mubr.bf16.gmra.mxu0 %v774
      %v813 = vpop.f32.mrf.mxu0
      %v814 = vadd.f32 0.0, %v813
      %v815 = vpop.f32.mrf.mxu0
      %v816 = vpop.f32.mrf.mxu0
      %v817 = vpop.f32.mrf.mxu0
      %818 = vdwg.mxu0
      %v819 = vmul.f32 %v576, %v576
      %v820 = vmul.f32 %v579, %v579
      %v821 = vsel %vm392, %v819, 0.0
      %822 = vadd.xlane.f32.xlu0 %v821
      %v823 = vpop.xlane.xlu0 %822
      %v824 = vsel %vm392, %v820, 0.0
      %825 = vadd.xlane.f32.xlu0 %v824
      %v826 = vpop.xlane.xlu0 %825
      %v827 = vmul.f32 %v823, 0.5
      %v828 = vmul.f32 %v826, 0.5
      %v831 = vlaneseq
      %v832 = vand.u32 %v831, 127
      %v833 = vlaneseq
      %v834 = vshrl.u32 %v833, 7
      %v835 = vsub.s32 %v832, %v834
      %v836 = vrot.slane %v827, %v835
      %v837 = vlaneseq
      %v838 = vshrl.u32 %v837, 7
      %v839 = vsub.s32 %v832, %v838
      %v840 = vrot.slane %v828, %v839
      %vm841 = vcmask 1042434
      %v842 = vsel %vm841, %v836, %v836
      %vm843 = vcmask 1043459
      %v844 = vsel %vm843, %v836, %v842
      %vm845 = vcmask 1044484
      %v846 = vsel %vm845, %v836, %v844
      %vm847 = vcmask 1045509
      %v848 = vsel %vm847, %v836, %v846
      %vm849 = vcmask 1046534
      %v850 = vsel %vm849, %v836, %v848
      %vm851 = vcmask 1047559
      %v852 = vsel %vm851, %v836, %v850
      %v853 = vsel %vm841, %v840, %v840
      %v854 = vsel %vm843, %v840, %v853
      %v855 = vsel %vm845, %v840, %v854
      %v856 = vsel %vm847, %v840, %v855
      %v857 = vsel %vm849, %v840, %v856
      %v858 = vsel %vm851, %v840, %v857
      %v861 = vsub.f32 %v768, %v852
      %v862 = vsub.f32 %v814, %v858
      %vm863 = vcmask 64512
      %v864 = vsel %vm863, %v861, -inf
      %865 = vmax.xlane.f32.xlu0 %v864
      %v866 = vpop.xlane.xlu0 %865
      %v867 = vsel %vm863, %v862, -inf
      %868 = vmax.xlane.f32.xlu0 %v867
      %v869 = vpop.xlane.xlu0 %868
      %v870 = vsub.f32 %v861, %v866
      %v871 = vsub.f32 %v862, %v869
      %v872 = vmul.f32 %v870, 1.442695
      %v873 = vpow.pop %v872
      %v874 = vmul.f32 %v871, 1.442695
      %v875 = vpow.pop %v874
      %v876 = vsel %vm863, %v873, 0.0
      %877 = vadd.xlane.f32.xlu0 %v876
      %v878 = vpop.xlane.xlu0 %877
      %v879 = vsel %vm863, %v875, 0.0
      %880 = vadd.xlane.f32.xlu0 %v879
      %v881 = vpop.xlane.xlu0 %880
      %v882 = vrcp.pop %v878
      %v883 = vrcp.pop %v881
      %v884 = vmul.f32 %v873, %v882
      %v885 = vmul.f32 %v875, %v883
      %v886 = vpack.c.bf16 %v884, %v884
      %v887 = vpack.c.bf16 %v885, %v885
      %v888 = vld [vmem:[%s366] sm:$0xff]
      %v889 = vld [vmem:[%s366 + $0x8] sm:$0xff]
      %v890 = vpack.c.bf16 %v888, %v888
      %v891 = vpack.c.bf16 %v889, %v889
      %v893 = vsel %vm863, %v886, 0
      %vm895 = vcmask 1043456
      %v897 = vsel %vm895, %v890, 0
      %899 = vmatprep.subr.bf16.mxu0 0
      %900 = vmatpush1.bf16.msra.mxu0 0
      %901 = vmatprep.subr.bf16.mxu0 0
      %902 = vmatpush1.bf16.msra.mxu0 0
      %903 = vmatprep.subr.bf16.mxu0 0
      %904 = vmatpush1.bf16.msra.mxu0 0
      %905 = vmatprep.subr.bf16.mxu0 0
      %906 = vmatpush1.bf16.msra.mxu0 0
      %907 = vmatprep.subr.bf16.mxu0 0
      %908 = vmatpush1.bf16.msra.mxu0 0
      %909 = vmatprep.subr.bf16.mxu0 0
      %910 = vmatpush1.bf16.msra.mxu0 0
      %911 = vmatprep.subr.bf16.mxu0 0
      %912 = vmatpush1.bf16.msra.mxu0 0
      %913 = vmatprep.subr.bf16.mxu0 0
      %914 = vmatpush1.bf16.msra.mxu0 %v897
      %915 = vmatprep.subr.bf16.mxu0 0
      %916 = vmatpush2.bf16.msra.mxu0 0
      %917 = vmatprep.subr.bf16.mxu0 0
      %918 = vmatpush2.bf16.msra.mxu0 0
      %919 = vmatprep.subr.bf16.mxu0 0
      %920 = vmatpush2.bf16.msra.mxu0 0
      %921 = vmatprep.subr.bf16.mxu0 0
      %922 = vmatpush2.bf16.msra.mxu0 0
      %923 = vmatprep.subr.bf16.mxu0 0
      %924 = vmatpush2.bf16.msra.mxu0 0
      %925 = vmatprep.subr.bf16.mxu0 0
      %926 = vmatpush2.bf16.msra.mxu0 0
      %927 = vmatprep.subr.bf16.mxu0 0
      %928 = vmatpush2.bf16.msra.mxu0 0
      %929 = vmatprep.subr.bf16.mxu0 0
      %930 = vmatpush2.bf16.msra.mxu0 0
      %931 = vmatprep.mubr.bf16.mxu0 0
      %932 = vmatmul.mubr.bf16.gmra.mxu0 %v893
      %v933 = vpop.f32.mrf.mxu0
      %v934 = vadd.f32 0.0, %v933
      %v935 = vpop.f32.mrf.mxu0
      %v936 = vpop.f32.mrf.mxu0
      %v937 = vpop.f32.mrf.mxu0
      %938 = vdwg.mxu0
      %v940 = vsel %vm863, %v887, 0
      %v943 = vsel %vm895, %v891, 0
      %945 = vmatprep.subr.bf16.mxu0 0
      %946 = vmatpush1.bf16.msra.mxu0 0
      %947 = vmatprep.subr.bf16.mxu0 0
      %948 = vmatpush1.bf16.msra.mxu0 0
      %949 = vmatprep.subr.bf16.mxu0 0
      %950 = vmatpush1.bf16.msra.mxu0 0
      %951 = vmatprep.subr.bf16.mxu0 0
      %952 = vmatpush1.bf16.msra.mxu0 0
      %953 = vmatprep.subr.bf16.mxu0 0
      %954 = vmatpush1.bf16.msra.mxu0 0
      %955 = vmatprep.subr.bf16.mxu0 0
      %956 = vmatpush1.bf16.msra.mxu0 0
      %957 = vmatprep.subr.bf16.mxu0 0
      %958 = vmatpush1.bf16.msra.mxu0 0
      %959 = vmatprep.subr.bf16.mxu0 0
      %960 = vmatpush1.bf16.msra.mxu0 %v943
      %961 = vmatprep.subr.bf16.mxu0 0
      %962 = vmatpush2.bf16.msra.mxu0 0
      %963 = vmatprep.subr.bf16.mxu0 0
      %964 = vmatpush2.bf16.msra.mxu0 0
      %965 = vmatprep.subr.bf16.mxu0 0
      %966 = vmatpush2.bf16.msra.mxu0 0
      %967 = vmatprep.subr.bf16.mxu0 0
      %968 = vmatpush2.bf16.msra.mxu0 0
      %969 = vmatprep.subr.bf16.mxu0 0
      %970 = vmatpush2.bf16.msra.mxu0 0
      %971 = vmatprep.subr.bf16.mxu0 0
      %972 = vmatpush2.bf16.msra.mxu0 0
      %973 = vmatprep.subr.bf16.mxu0 0
      %974 = vmatpush2.bf16.msra.mxu0 0
      %975 = vmatprep.subr.bf16.mxu0 0
      %976 = vmatpush2.bf16.msra.mxu0 0
      %977 = vmatprep.mubr.bf16.mxu0 0
      %978 = vmatmul.mubr.bf16.gmra.mxu0 %v940
      %v979 = vpop.f32.mrf.mxu0
      %v980 = vadd.f32 0.0, %v979
      %v981 = vpop.f32.mrf.mxu0
      %v982 = vpop.f32.mrf.mxu0
      %v983 = vpop.f32.mrf.mxu0
      %984 = vdwg.mxu0
      %985 = vst.msk [vmem:[%s378] sm:$0xff] %vm392, %v934
      %986 = vst.msk [vmem:[%s378 + $0x8] sm:$0xff] %vm392, %v980
      %s987 = smul.u32 2, %s20
      %p988 = scmp.lt.s32.totalorder %s987, 3
      %s989 = scalar_select %p988, %s987, 3
      %s990 = smul.addr %s989, 8
      %s991 = scalar_lea.vmem %s9, %s990
      // Predicated region
      $region57: #{tpu_custom_call.1} parent=55 // pred_check
        %p992 = pneg %p242
      $region58: #{tpu_custom_call.1} parent=55 // pred_check_branch
        %994 = sbr.rel (%p992) target = $region60
      $region59: #{tpu_custom_call.1} parent=55 // pred_region
        %s995 = smul.u32 2, %s20
      $region60: #{tpu_custom_call.1} parent=55 // pred_fallthru
        _
    $region56: #{tpu_custom_call.1} parent=5 // pred_fallthru
      _
    %p996 = scmp.le.s32.totalorder 2, %s15
    // Predicated region
    $region61: #{tpu_custom_call.1} parent=5 // pred_check
      %p997 = pneg %p996
    $region62: #{tpu_custom_call.1} parent=5 // pred_check_branch
      %999 = sbr.rel (%p997) target = $region64
    $region63: #{tpu_custom_call.1} parent=5 // pred_region
      %s1000 = ssub.s32 %s15, 2
      // Predicated region
      $region65: #{tpu_custom_call.1} parent=63 // pred_check
        %p1001 = pneg %p248
      $region66: #{tpu_custom_call.1} parent=63 // pred_check_branch
        %1003 = sbr.rel (%p1001) target = $region68
      $region67: #{tpu_custom_call.1} parent=63 // pred_region
        %s1004 = smul.u32 2, %s21
        %p1005 = scmp.lt.s32.totalorder %s1004, 3
        %s1006 = scalar_select %p1005, %s1004, 3
        %s1007 = smul.addr %s1006, 8
        %s1008 = scalar_lea.vmem %s9, %s1007
      $region68: #{tpu_custom_call.1} parent=63 // pred_fallthru
        _
    $region64: #{tpu_custom_call.1} parent=5 // pred_fallthru
      _
  $region6: #{tpu_custom_call.1} parent=0 // loop_footer
    %s19 = sadd.s32 1, %s15
  $region7: #{tpu_custom_call.1} parent=0 // loop_footer_branch
    %14 = sbr.rel target = $region3
  $region8: #{tpu_custom_call.1} parent=0 // loop_exit
    _

</llo_original>
